<compile_context>
chip_gen: v6e
topology: v6e:2x2x1
jax: 0.10.0
libtpu: 0.0.40
codegen_flags: <defaults>
</compile_context>

<pallas_src>
import jax
import jax.numpy as jnp
from jax.experimental import pallas as pl
from jax.experimental.pallas import tpu as pltpu


def _leaky_relu(x, negative_slope=0.01):
    # Equivalent to where(x > 0, x, slope*x) for 0 < slope < 1, one fewer VALU op.
    return jnp.maximum(x, negative_slope * x)


def _round_up(n, m):
    return (n + m - 1) // m * m


def mlp_kernel(x_ref, w1_ref, b1_ref, w2_ref, b2_ref, w3t_ref, b3_ref, o_ref):
    # x_ref : [2, TN] f32  (batch on the lane axis)
    # w1    : [H, 2] f32    b1 : [H, 1] f32
    # w2    : [H, H] bf16   b2 : [H, 1] f32
    # w3t   : [H, 1] f32    b3 : [1] f32 (SMEM scalar)
    # o_ref : [1, TN] f32
    x0 = x_ref[0:1, :]                      # [1, TN]
    x1 = x_ref[1:2, :]                      # [1, TN]

    # Layer 1: K=2 contraction as two VPU broadcast-FMAs (no MXU pass).
    h = w1_ref[:, 0:1] * x0 + w1_ref[:, 1:2] * x1 + b1_ref[...]   # [H, TN] f32
    h = _leaky_relu(h)

    # Layer 2: HxH on the MXU, bf16 operands, f32 accumulation.
    h = jnp.dot(w2_ref[...], h.astype(jnp.bfloat16),
                preferred_element_type=jnp.float32) + b2_ref[...]
    h = _leaky_relu(h)

    # Layer 3: H -> 1 as a weighted sublane reduction (XLU); b3 folded in.
    y = jnp.sum(w3t_ref[...] * h, axis=0, keepdims=True) + b3_ref[0]
    o_ref[...] = y.astype(o_ref.dtype)


def regression_net_forward(x, params, *, tile_n=32768):
    """x: [N, 2] float32 (PyTorch layout). Returns [N, 1] float32."""
    n = x.shape[0]
    h = params["w1"].shape[0]

    # Feature-major view for lane-dense compute.  (If the producer can hand us
    # x already as [2, N], this transpose -- the only wrapper-side HBM pass --
    # disappears entirely.)  No padding: partial final block handles the edge.
    x_t = x.T.astype(jnp.float32)           # [2, N]

    n_lanes = _round_up(n, 128)
    tn = min(tile_n, n_lanes)
    # Once tiles are big enough to amortize per-step overhead, keep >=2 grid
    # steps so v7x's 2 TensorCores both get work under "parallel" semantics.
    half = _round_up(pl.cdiv(n_lanes, 2), 128)
    if half >= 1024:
        tn = min(tn, half)

    grid = (pl.cdiv(n, tn),)
    out = pl.pallas_call(
        mlp_kernel,
        out_shape=jax.ShapeDtypeStruct((1, n), jnp.float32),
        grid=grid,
        in_specs=[
            pl.BlockSpec((2, tn), lambda i: (0, i)),            # x tile (pipelined)
            pl.BlockSpec((h, 2), lambda i: (0, 0)),             # w1 (VMEM-resident)
            pl.BlockSpec((h, 1), lambda i: (0, 0)),             # b1 (resident)
            pl.BlockSpec((h, h), lambda i: (0, 0)),             # w2 bf16 (resident)
            pl.BlockSpec((h, 1), lambda i: (0, 0)),             # b2 (resident)
            pl.BlockSpec((h, 1), lambda i: (0, 0)),             # w3^T (resident)
            pl.BlockSpec(memory_space=pltpu.MemorySpace.SMEM),  # b3 scalar
        ],
        out_specs=pl.BlockSpec((1, tn), lambda i: (0, i)),
        compiler_params=pltpu.CompilerParams(
            dimension_semantics=("parallel",),   # megacore sharding on v7x
            # ~16 MiB peak working set at TN=32K, H=32; leaves headroom even on
            # v7x's 64 MiB physical VMEM.  Re-derive if tile_n or H is scaled up.
            vmem_limit_bytes=32 * 1024 * 1024,
        ),
    )(
        x_t,
        params["w1"], params["b1"],
        params["w2"], params["b2"],
        params["w3t"], params["b3"],
    )
    return out[0, :].reshape(n, 1)


def init_params(key, hdims):
    """PyTorch nn.Linear-style init (uniform +-1/sqrt(fan_in)), stored in kernel
    layout: weights as [out, in] (kernel computes W @ x), biases as [out, 1],
    w3 pre-transposed to [H, 1], b3 as a length-1 scalar.  w2 is stored bf16
    for the MXU (cast once here, outside the grid); an f32 copy is kept only
    for the reference check."""
    ks = jax.random.split(key, 6)

    def lin(kw, kb, fan_in, fan_out):
        bound = 1.0 / jnp.sqrt(jnp.float32(fan_in))
        w = jax.random.uniform(kw, (fan_out, fan_in), jnp.float32, -bound, bound)
        b = jax.random.uniform(kb, (fan_out, 1), jnp.float32, -bound, bound)
        return w, b

    w1, b1 = lin(ks[0], ks[1], 2, hdims)
    w2, b2 = lin(ks[2], ks[3], hdims, hdims)
    w3, b3 = lin(ks[4], ks[5], hdims, 1)
    return {
        "w1": w1, "b1": b1,
        "w2": w2.astype(jnp.bfloat16),   # MXU operand
        "w2_f32": w2,                    # reference only
        "b2": b2,
        "w3t": w3.T,                     # [H, 1]
        "b3": b3.reshape(1),             # [1]
    }


def reference_forward(x, p):
    h = _leaky_relu(x @ p["w1"].T + p["b1"].T)
    h = _leaky_relu(h @ p["w2_f32"].T + p["b2"].T)
    return h @ p["w3t"] + p["b3"]


if __name__ == "__main__":
    key = jax.random.PRNGKey(0)
    k_param, k_x = jax.random.split(key)

    hdims = 32
    batch = 8
    params = init_params(k_param, hdims)
    x = jax.random.normal(k_x, (batch, 2), jnp.float32)

    out = regression_net_forward(x, params)
    out = jax.block_until_ready(out)

    ref = reference_forward(x, params)
    assert out.shape == (batch, 1)
    # Tolerance loosened vs an all-f32 path because layer 2 uses bf16 MXU operands.
    err = float(jnp.max(jnp.abs(out - ref)))
    assert jnp.allclose(out, ref, atol=2e-2, rtol=2e-2), err

    print("KERNEL_OK")
</pallas_src>

<mosaic_0001>
module attributes {stable_mosaic.version = 11 : i64} {
  func.func @mlp_kernel(%arg0: i32, %arg1: memref<2x128xf32, #tpu.memory_space<vmem>>, %arg2: memref<32x2xf32, #tpu.memory_space<vmem>>, %arg3: memref<32x1xf32, #tpu.memory_space<vmem>>, %arg4: memref<32x32xbf16, #tpu.memory_space<vmem>>, %arg5: memref<32x1xf32, #tpu.memory_space<vmem>>, %arg6: memref<32x1xf32, #tpu.memory_space<vmem>>, %arg7: memref<1xf32, #tpu.memory_space<smem>>, %arg8: memref<1x128xf32, #tpu.memory_space<vmem>>) attributes {dimension_semantics = [#tpu.dimension_semantics<parallel>], iteration_bounds = array<i64: 1>, scalar_prefetch = 0 : i64, scratch_operands = 0 : i64, tpu.core_type = #tpu.core_type<tc>, window_params = [{transform_indices = @transform_0, window_bounds = array<i64: 2, 128>}, {pipeline_mode = #tpu.pipeline_mode<synchronous>, transform_indices = @transform_1, window_bounds = array<i64: 32, 2>}, {pipeline_mode = #tpu.pipeline_mode<synchronous>, transform_indices = @transform_2, window_bounds = array<i64: 32, 1>}, {pipeline_mode = #tpu.pipeline_mode<synchronous>, transform_indices = @transform_3, window_bounds = array<i64: 32, 32>}, {pipeline_mode = #tpu.pipeline_mode<synchronous>, transform_indices = @transform_4, window_bounds = array<i64: 32, 1>}, {pipeline_mode = #tpu.pipeline_mode<synchronous>, transform_indices = @transform_5, window_bounds = array<i64: 32, 1>}, {transform_indices = @transform_6, window_bounds = array<i64: 1>}, {transform_indices = @transform_7, window_bounds = array<i64: 1, 128>}]} {
    %c0 = arith.constant 0 : index
    %c0_0 = arith.constant 0 : index
    %0 = vector.load %arg1[%c0, %c0_0] : memref<2x128xf32, #tpu.memory_space<vmem>>, vector<1x128xf32>
    %c1 = arith.constant 1 : index
    %c0_1 = arith.constant 0 : index
    %1 = vector.load %arg1[%c1, %c0_1] : memref<2x128xf32, #tpu.memory_space<vmem>>, vector<1x128xf32>
    %c0_2 = arith.constant 0 : index
    %c0_3 = arith.constant 0 : index
    %2 = vector.load %arg2[%c0_2, %c0_3] : memref<32x2xf32, #tpu.memory_space<vmem>>, vector<32x1xf32>
    %3 = vector.broadcast %2 : vector<32x1xf32> to vector<32x128xf32>
    %4 = vector.broadcast %0 : vector<1x128xf32> to vector<32x128xf32>
    %5 = arith.mulf %3, %4 : vector<32x128xf32>
    %c0_4 = arith.constant 0 : index
    %c1_5 = arith.constant 1 : index
    %6 = vector.load %arg2[%c0_4, %c1_5] : memref<32x2xf32, #tpu.memory_space<vmem>>, vector<32x1xf32>
    %7 = vector.broadcast %6 : vector<32x1xf32> to vector<32x128xf32>
    %8 = vector.broadcast %1 : vector<1x128xf32> to vector<32x128xf32>
    %9 = arith.mulf %7, %8 : vector<32x128xf32>
    %10 = arith.addf %5, %9 : vector<32x128xf32>
    %c0_6 = arith.constant 0 : index
    %c0_7 = arith.constant 0 : index
    %11 = vector.load %arg3[%c0_6, %c0_7] : memref<32x1xf32, #tpu.memory_space<vmem>>, vector<32x1xf32>
    %12 = vector.broadcast %11 : vector<32x1xf32> to vector<32x128xf32>
    %13 = arith.addf %10, %12 : vector<32x128xf32>
    %cst = arith.constant 0.00999999977 : f32
    %14 = vector.broadcast %cst : f32 to vector<32x128xf32>
    %15 = arith.mulf %14, %13 : vector<32x128xf32>
    %16 = arith.maximumf %13, %15 : vector<32x128xf32>
    %c0_8 = arith.constant 0 : index
    %c0_9 = arith.constant 0 : index
    %17 = vector.load %arg4[%c0_8, %c0_9] : memref<32x32xbf16, #tpu.memory_space<vmem>>, vector<32x32xbf16>
    %18 = arith.truncf %16 : vector<32x128xf32> to vector<32x128xbf16>
    %cst_10 = arith.constant dense<0.000000e+00> : vector<32x128xf32>
    %19 = tpu.matmul %17, %18, %cst_10 {dimension_numbers = #tpu.dot_dimension_numbers<[1], [0], [0], [1], [0, 0, 1, 1], [], []>} : vector<32x32xbf16>, vector<32x128xbf16>, vector<32x128xf32> -> vector<32x128xf32>
    %c0_11 = arith.constant 0 : index
    %c0_12 = arith.constant 0 : index
    %20 = vector.load %arg5[%c0_11, %c0_12] : memref<32x1xf32, #tpu.memory_space<vmem>>, vector<32x1xf32>
    %21 = vector.broadcast %20 : vector<32x1xf32> to vector<32x128xf32>
    %22 = arith.addf %19, %21 : vector<32x128xf32>
    %cst_13 = arith.constant 0.00999999977 : f32
    %23 = vector.broadcast %cst_13 : f32 to vector<32x128xf32>
    %24 = arith.mulf %23, %22 : vector<32x128xf32>
    %25 = arith.maximumf %22, %24 : vector<32x128xf32>
    %c0_14 = arith.constant 0 : index
    %c0_15 = arith.constant 0 : index
    %26 = vector.load %arg6[%c0_14, %c0_15] : memref<32x1xf32, #tpu.memory_space<vmem>>, vector<32x1xf32>
    %27 = vector.broadcast %26 : vector<32x1xf32> to vector<32x128xf32>
    %28 = arith.mulf %27, %25 : vector<32x128xf32>
    %cst_16 = arith.constant dense<0.000000e+00> : vector<128xf32>
    %29 = vector.multi_reduction <add>, %28, %cst_16 [0] : vector<32x128xf32> to vector<128xf32>
    %30 = vector.shape_cast %29 : vector<128xf32> to vector<1x128xf32>
    %c0_17 = arith.constant 0 : index
    %31 = memref.load %arg7[%c0_17] : memref<1xf32, #tpu.memory_space<smem>>
    %32 = vector.broadcast %31 : f32 to vector<1x128xf32>
    %33 = arith.addf %30, %32 : vector<1x128xf32>
    %c0_18 = arith.constant 0 : index
    %c0_19 = arith.constant 0 : index
    %34 = vector.load %arg8[%c0_18, %c0_19] : memref<1x128xf32, #tpu.memory_space<vmem>>, vector<1x128xf32>
    tpu.vector_store %arg8[%c0_18, %c0_19], %33 {strides = array<i32>} : memref<1x128xf32, #tpu.memory_space<vmem>>, vector<1x128xf32>,
    return
  }
  func.func @transform_0(%arg0: i32) -> (i32, i32) {
    %c0_i32 = arith.constant 0 : i32
    %c0_i32_0 = arith.constant 0 : i32
    return %c0_i32, %arg0 : i32, i32
  }
  func.func @transform_1(%arg0: i32) -> (i32, i32) {
    %c0_i32 = arith.constant 0 : i32
    %c0_i32_0 = arith.constant 0 : i32
    %c0_i32_1 = arith.constant 0 : i32
    return %c0_i32, %c0_i32_0 : i32, i32
  }
  func.func @transform_2(%arg0: i32) -> (i32, i32) {
    %c0_i32 = arith.constant 0 : i32
    %c0_i32_0 = arith.constant 0 : i32
    %c0_i32_1 = arith.constant 0 : i32
    return %c0_i32, %c0_i32_0 : i32, i32
  }
  func.func @transform_3(%arg0: i32) -> (i32, i32) {
    %c0_i32 = arith.constant 0 : i32
    %c0_i32_0 = arith.constant 0 : i32
    %c0_i32_1 = arith.constant 0 : i32
    return %c0_i32, %c0_i32_0 : i32, i32
  }
  func.func @transform_4(%arg0: i32) -> (i32, i32) {
    %c0_i32 = arith.constant 0 : i32
    %c0_i32_0 = arith.constant 0 : i32
    %c0_i32_1 = arith.constant 0 : i32
    return %c0_i32, %c0_i32_0 : i32, i32
  }
  func.func @transform_5(%arg0: i32) -> (i32, i32) {
    %c0_i32 = arith.constant 0 : i32
    %c0_i32_0 = arith.constant 0 : i32
    %c0_i32_1 = arith.constant 0 : i32
    return %c0_i32, %c0_i32_0 : i32, i32
  }
  func.func @transform_6(%arg0: i32) -> i32 {
    %c0_i32 = arith.constant 0 : i32
    %c0_i32_0 = arith.constant 0 : i32
    return %c0_i32 : i32
  }
  func.func @transform_7(%arg0: i32) -> (i32, i32) {
    %c0_i32 = arith.constant 0 : i32
    %c0_i32_0 = arith.constant 0 : i32
    return %c0_i32, %arg0 : i32, i32
  }
}

</mosaic_0001>

<llo_original>
// kernel: tpu_custom_call.1
$region0: #{tpu_custom_call.1}
  #allocation0 [shape = 'u32[]', space=smem, size = 0x4, offset = 0x4, fixed_abs, tag = 'smem constant byte address 0x4 - core index']
  #allocation1 [shape = 'u32[144,128]{1,0:T(1,128)}', space=vmem, size = 0x12000, scoped, tag = 'internal scratch']
  #allocation2 [shape = 'f32[1]{0:T(128)S(6)}', space=smem, size = 0x200, scoped, tag = 'scoped memory for tpu_custom_call.1']
  %s0 = inlined_call_operand.vmem [shape: f32[2,8], index: 0, kind: input, shape index: {}]
  %s1 = inlined_call_operand.vmem [shape: f32[32,2], index: 1, kind: input, shape index: {}]
  %s2 = inlined_call_operand.vmem [shape: f32[32,1], index: 2, kind: input, shape index: {}]
  %s3 = inlined_call_operand.vmem [shape: bf16[32,32], index: 3, kind: input, shape index: {}]
  %s4 = inlined_call_operand.vmem [shape: f32[32,1], index: 4, kind: input, shape index: {}]
  %s5 = inlined_call_operand.vmem [shape: f32[32,1], index: 5, kind: input, shape index: {}]
  %s6 = inlined_call_operand.<no memory space> [shape: f32[1], index: 6, kind: input, shape index: {}]
  %s7 = inlined_call_operand.hbm [shape: f32[1,8], index: 7, kind: output, shape index: {}]
  %s8 = sld [smem:[#allocation0]]
  $region38: #{tpu_custom_call.1} parent=0
    _
  %s10 = ssub.s32 1, %s8
  %s11 = scalar_select 0, %s10, %s8
  %12 = sst [smem:[#allocation2]] %s6
  $region1: #{tpu_custom_call.1} parent=0
    #allocation3 [shape = 'u8[512]{0}', space=vmem, size = 0x400, scoped, tag = 'output window, operand 0, single buffered']
    #allocation4 [shape = 's32[1]{0}', space=sflag, size = 0x4, scoped, tag = 'scoped memory for tpu_custom_call.1']
    %13 = vsyncpa [#allocation4], 0
    // Predicated region
    $region2: #{tpu_custom_call.1} parent=1 // pred_check
      _
    $region3: #{tpu_custom_call.1} parent=1 // pred_check_branch
      %15 = sbr.rel (0) target = $region5
    $region4: #{tpu_custom_call.1} parent=1 // pred_region
      _
    $region5: #{tpu_custom_call.1} parent=1 // pred_fallthru
      _
    // Predicated region
    $region6: #{tpu_custom_call.1} parent=1 // pred_check
      _
    $region7: #{tpu_custom_call.1} parent=1 // pred_check_branch
      %17 = sbr.rel (0) target = $region9
    $region8: #{tpu_custom_call.1} parent=1 // pred_region
      _
    $region9: #{tpu_custom_call.1} parent=1 // pred_fallthru
      _
    // Predicated region
    $region10: #{tpu_custom_call.1} parent=1 // pred_check
      _
    $region11: #{tpu_custom_call.1} parent=1 // pred_check_branch
      %19 = sbr.rel (0) target = $region13
    $region12: #{tpu_custom_call.1} parent=1 // pred_region
      _
    $region13: #{tpu_custom_call.1} parent=1 // pred_fallthru
      _
    // Predicated region
    $region14: #{tpu_custom_call.1} parent=1 // pred_check
      _
    $region15: #{tpu_custom_call.1} parent=1 // pred_check_branch
      %21 = sbr.rel (0) target = $region17
    $region16: #{tpu_custom_call.1} parent=1 // pred_region
      _
    $region17: #{tpu_custom_call.1} parent=1 // pred_fallthru
      _
    // Predicated region
    $region18: #{tpu_custom_call.1} parent=1 // pred_check
      _
    $region19: #{tpu_custom_call.1} parent=1 // pred_check_branch
      %23 = sbr.rel (0) target = $region21
    $region20: #{tpu_custom_call.1} parent=1 // pred_region
      _
    $region21: #{tpu_custom_call.1} parent=1 // pred_fallthru
      _
    // Predicated region
    $region22: #{tpu_custom_call.1} parent=1 // pred_check
      _
    $region23: #{tpu_custom_call.1} parent=1 // pred_check_branch
      %25 = sbr.rel (0) target = $region25
    $region24: #{tpu_custom_call.1} parent=1 // pred_region
      _
    $region25: #{tpu_custom_call.1} parent=1 // pred_fallthru
      _
    // Predicated region
    $region26: #{tpu_custom_call.1} parent=1 // pred_check
      _
    $region27: #{tpu_custom_call.1} parent=1 // pred_check_branch
      %27 = sbr.rel (0) target = $region29
    $region28: #{tpu_custom_call.1} parent=1 // pred_region
      _
    $region29: #{tpu_custom_call.1} parent=1 // pred_fallthru
      _
    %v29 = vld [vmem:[%s0] sm:$0x1]
    %v30 = vld [vmem:[%s0 + $0x1] sm:$0x1]
    %v31 = vld [vmem:[%s1] sm:$0xff]
    %v32 = vld [vmem:[%s1 + $0x8] sm:$0xff]
    %v33 = vld [vmem:[%s1 + $0x10] sm:$0xff]
    %v34 = vld [vmem:[%s1 + $0x18] sm:$0xff]
    %36 = vset.pattern.permute.xlu0 0
    %37 = vperm.xlu0 %36, %v31
    %v38 = vpop.permute.xlu0 %37
    %41 = vset.pattern.permute.xlu0 0
    %42 = vperm.xlu0 %41, %v32
    %v43 = vpop.permute.xlu0 %42
    %46 = vset.pattern.permute.xlu0 0
    %47 = vperm.xlu0 %46, %v33
    %v48 = vpop.permute.xlu0 %47
    %51 = vset.pattern.permute.xlu0 0
    %52 = vperm.xlu0 %51, %v34
    %v53 = vpop.permute.xlu0 %52
    %v55 = vlaneseq
    %v56 = vshrl.u32 %v55, 7
    %v57 = vsub.s32 0, %v56
    %v58 = vrot.slane %v29, %v57
    %v59 = vmul.f32 %v38, %v58
    %v60 = vmul.f32 %v43, %v58
    %v61 = vmul.f32 %v48, %v58
    %v62 = vmul.f32 %v53, %v58
    %63 = vset.pattern.permute.xlu0 1
    %64 = vperm.xlu0 %63, %v31
    %v65 = vpop.permute.xlu0 %64
    %67 = vset.pattern.permute.xlu0 1
    %68 = vperm.xlu0 %67, %v32
    %v69 = vpop.permute.xlu0 %68
    %71 = vset.pattern.permute.xlu0 1
    %72 = vperm.xlu0 %71, %v33
    %v73 = vpop.permute.xlu0 %72
    %75 = vset.pattern.permute.xlu0 1
    %76 = vperm.xlu0 %75, %v34
    %v77 = vpop.permute.xlu0 %76
    %v79 = vlaneseq
    %v80 = vshrl.u32 %v79, 7
    %v81 = vsub.s32 0, %v80
    %v82 = vrot.slane %v30, %v81
    %v83 = vmul.f32 %v65, %v82
    %v84 = vmul.f32 %v69, %v82
    %v85 = vmul.f32 %v73, %v82
    %v86 = vmul.f32 %v77, %v82
    %v87 = vadd.f32 %v59, %v83
    %v88 = vadd.f32 %v60, %v84
    %v89 = vadd.f32 %v61, %v85
    %v90 = vadd.f32 %v62, %v86
    %v91 = vld [vmem:[%s2] sm:$0xff]
    %v92 = vld [vmem:[%s2 + $0x8] sm:$0xff]
    %v93 = vld [vmem:[%s2 + $0x10] sm:$0xff]
    %v94 = vld [vmem:[%s2 + $0x18] sm:$0xff]
    %96 = vset.pattern.permute.xlu0 0
    %97 = vperm.xlu0 %96, %v91
    %v98 = vpop.permute.xlu0 %97
    %101 = vset.pattern.permute.xlu0 0
    %102 = vperm.xlu0 %101, %v92
    %v103 = vpop.permute.xlu0 %102
    %106 = vset.pattern.permute.xlu0 0
    %107 = vperm.xlu0 %106, %v93
    %v108 = vpop.permute.xlu0 %107
    %111 = vset.pattern.permute.xlu0 0
    %112 = vperm.xlu0 %111, %v94
    %v113 = vpop.permute.xlu0 %112
    %v115 = vadd.f32 %v87, %v98
    %v116 = vadd.f32 %v88, %v103
    %v117 = vadd.f32 %v89, %v108
    %v118 = vadd.f32 %v90, %v113
    %v119 = vmul.f32 %v115, 0.01
    %v120 = vmul.f32 %v116, 0.01
    %v121 = vmul.f32 %v117, 0.01
    %v122 = vmul.f32 %v118, 0.01
    %v123 = vmax.f32 %v115, %v119
    %v124 = vmax.f32 %v116, %v120
    %v125 = vmax.f32 %v117, %v121
    %v126 = vmax.f32 %v118, %v122
    %v127 = vld [vmem:[%s3] sm:$0xf]
    %v128 = vld [vmem:[%s3 + $0x4] sm:$0xf]
    %v129 = vld [vmem:[%s3 + $0x8] sm:$0xf]
    %v130 = vld [vmem:[%s3 + $0xc] sm:$0xf]
    %v131 = vpack.c.bf16 %v124, %v123
    %v132 = vpack.c.bf16 %v126, %v125
    %v133 = vld [vmem:[%s4] sm:$0xff]
    %v134 = vld [vmem:[%s4 + $0x8] sm:$0xff]
    %v135 = vld [vmem:[%s4 + $0x10] sm:$0xff]
    %v136 = vld [vmem:[%s4 + $0x18] sm:$0xff]
    %138 = vset.pattern.permute.xlu0 0
    %139 = vperm.xlu0 %138, %v133
    %v140 = vpop.permute.xlu0 %139
    %143 = vset.pattern.permute.xlu0 0
    %144 = vperm.xlu0 %143, %v134
    %v145 = vpop.permute.xlu0 %144
    %148 = vset.pattern.permute.xlu0 0
    %149 = vperm.xlu0 %148, %v135
    %v150 = vpop.permute.xlu0 %149
    %153 = vset.pattern.permute.xlu0 0
    %154 = vperm.xlu0 %153, %v136
    %v155 = vpop.permute.xlu0 %154
    %v161 = vunpack.c.l.b16 %v127
    %v162 = vunpack.c.l.b16 %v128
    %v163 = vunpack.c.l.b16 %v129
    %v164 = vunpack.c.l.b16 %v130
    %v165 = vpack.c.b16 %v162, %v161
    %v166 = vpack.c.b16 %v164, %v163
    %vm167 = vcmask 261120
    %v169 = vsel %vm167, %v165, 0
    %v172 = vsel %vm167, %v166, 0
    %174 = vmatprep.subr.bf16.mxu0 0
    %175 = vmatpush1.bf16.msra.mxu0 0
    %176 = vmatprep.subr.bf16.mxu0 0
    %177 = vmatpush1.bf16.msra.mxu0 0
    %178 = vmatprep.subr.bf16.mxu0 0
    %179 = vmatpush1.bf16.msra.mxu0 0
    %180 = vmatprep.subr.bf16.mxu0 0
    %181 = vmatpush1.bf16.msra.mxu0 0
    %182 = vmatprep.subr.bf16.mxu0 0
    %183 = vmatpush1.bf16.msra.mxu0 0
    %184 = vmatprep.subr.bf16.mxu0 0
    %185 = vmatpush1.bf16.msra.mxu0 0
    %186 = vmatprep.subr.bf16.mxu0 0
    %187 = vmatpush1.bf16.msra.mxu0 %v132
    %188 = vmatprep.subr.bf16.mxu0 0
    %189 = vmatpush1.bf16.msra.mxu0 %v131
    %190 = vmatprep.subr.bf16.mxu0 0
    %191 = vmatpush2.bf16.msra.mxu0 0
    %192 = vmatprep.subr.bf16.mxu0 0
    %193 = vmatpush2.bf16.msra.mxu0 0
    %194 = vmatprep.subr.bf16.mxu0 0
    %195 = vmatpush2.bf16.msra.mxu0 0
    %196 = vmatprep.subr.bf16.mxu0 0
    %197 = vmatpush2.bf16.msra.mxu0 0
    %198 = vmatprep.subr.bf16.mxu0 0
    %199 = vmatpush2.bf16.msra.mxu0 0
    %200 = vmatprep.subr.bf16.mxu0 0
    %201 = vmatpush2.bf16.msra.mxu0 0
    %202 = vmatprep.subr.bf16.mxu0 0
    %203 = vmatpush2.bf16.msra.mxu0 0
    %204 = vmatprep.subr.bf16.mxu0 0
    %205 = vmatpush2.bf16.msra.mxu0 0
    %206 = vmatprep.mubr.bf16.mxu0 0
    %207 = vmatmul.mubr.bf16.gmra.mxu0 %v169
    %v208 = vpop.f32.mrf.mxu0
    %v209 = vadd.f32 %v140, %v208
    %v210 = vpop.f32.mrf.mxu0
    %v211 = vpop.f32.mrf.mxu0
    %v212 = vadd.f32 %v145, %v211
    %v213 = vpop.f32.mrf.mxu0
    %214 = vmatprep.mubr.bf16.mxu0 0
    %215 = vmatmul.mubr.bf16.gmra.mxu0 %v172
    %v216 = vpop.f32.mrf.mxu0
    %v217 = vadd.f32 %v150, %v216
    %v218 = vpop.f32.mrf.mxu0
    %v219 = vpop.f32.mrf.mxu0
    %v220 = vadd.f32 %v155, %v219
    %v221 = vpop.f32.mrf.mxu0
    %222 = vdwg.mxu0
    %v223 = vmul.f32 %v209, 0.01
    %v224 = vmul.f32 %v212, 0.01
    %v225 = vmul.f32 %v217, 0.01
    %v226 = vmul.f32 %v220, 0.01
    %v227 = vmax.f32 %v209, %v223
    %v228 = vmax.f32 %v212, %v224
    %v229 = vmax.f32 %v217, %v225
    %v230 = vmax.f32 %v220, %v226
    %v231 = vld [vmem:[%s5] sm:$0xff]
    %v232 = vld [vmem:[%s5 + $0x8] sm:$0xff]
    %v233 = vld [vmem:[%s5 + $0x10] sm:$0xff]
    %v234 = vld [vmem:[%s5 + $0x18] sm:$0xff]
    %236 = vset.pattern.permute.xlu0 0
    %237 = vperm.xlu0 %236, %v231
    %v238 = vpop.permute.xlu0 %237
    %241 = vset.pattern.permute.xlu0 0
    %242 = vperm.xlu0 %241, %v232
    %v243 = vpop.permute.xlu0 %242
    %246 = vset.pattern.permute.xlu0 0
    %247 = vperm.xlu0 %246, %v233
    %v248 = vpop.permute.xlu0 %247
    %251 = vset.pattern.permute.xlu0 0
    %252 = vperm.xlu0 %251, %v234
    %v253 = vpop.permute.xlu0 %252
    %v255 = vmul.f32 %v238, %v227
    %v256 = vmul.f32 %v243, %v228
    %v257 = vmul.f32 %v248, %v229
    %v258 = vmul.f32 %v253, %v230
    %v259 = vadd.f32 %v255, %v256
    %v260 = vadd.f32 %v259, %v257
    %v261 = vadd.f32 %v260, %v258
    %v262 = vrot.slane %v261, 4
    %v263 = vadd.f32 %v261, %v262
    %v264 = vrot.slane %v263, 2
    %v265 = vadd.f32 %v263, %v264
    %v266 = vrot.slane %v265, 1
    %v267 = vadd.f32 %v265, %v266
    %s268 = sld [smem:[#allocation2]]
    %v269 = vstv %s268
    %v270 = vadd.f32 %v267, %v269
    %271 = vst [vmem:[#allocation3] sm:$0x1] %v270
    // Predicated region
    $region30: #{tpu_custom_call.1} parent=1 // pred_check
      _
    $region31: #{tpu_custom_call.1} parent=1 // pred_check_branch
      %273 = sbr.rel (0) target = $region33
    $region32: #{tpu_custom_call.1} parent=1 // pred_region
      %s275 = ssub.s32 16, 16
      %276 = vsyncadd [#allocation4], %s275
      %s278 = sshll.u32 [#allocation3], 4
      %s279 = int_to_ptr.vmem [resolvable:$true] %s278
      %281 = dma.vmem_to_hbm [thread:$0]  %s279, 16, %s7, [#allocation4]
    $region33: #{tpu_custom_call.1} parent=1 // pred_fallthru
      _
    // Predicated region
    $region34: #{tpu_custom_call.1} parent=1 // pred_check
      _
    $region35: #{tpu_custom_call.1} parent=1 // pred_check_branch
      %283 = sbr.rel (0) target = $region37
    $region36: #{tpu_custom_call.1} parent=1 // pred_region
      %284 = dma.done [#allocation4], 16
    $region37: #{tpu_custom_call.1} parent=1 // pred_fallthru
      _
    %285 = vsyncpa [#allocation4], 1

</llo_original>
